<compile_context>
chip_gen: v7x
topology: tpu7x:2x2x1
jax: 0.10.0
libtpu: 0.0.40
codegen_flags: <defaults>
</compile_context>

<pallas_src>
import jax
import jax.numpy as jnp
from jax.experimental import pallas as pl
from jax.experimental.pallas import tpu as pltpu


# --------------------------------------------------------------------------
# kernels
# --------------------------------------------------------------------------
def _fused_kernel(x_ref, w_ref, b_ref, o_ref):
    """Fused space-to-depth + 1x1x1 conv.

    x_ref: (C, dt, 2, H, W) raw-layout input block (D split into (D2, 2)).
    w_ref: (2C, 8C) resident weight.   b_ref: (2C, 1) resident bias (f32).
    o_ref: (2C, dt*H2*W2) lane-dense output block.
    """
    C, dt, _, H, W = x_ref.shape
    H2, W2 = H // 2, W // 2
    # (2,2,2) parity deinterleave in VMEM.  Channel-block order p = dd*4+hh*2+ww
    # matches torch.cat([x0..x7], dim=1), so the weight needs no permutation.
    pieces = []
    for dd in range(2):
        for hh in range(2):
            for ww in range(2):
                pieces.append(
                    x_ref[:, :, dd,
                          pl.ds(hh, H2, stride=2),
                          pl.ds(ww, W2, stride=2)])          # (C, dt, H2, W2)
    xm = jnp.concatenate(pieces, axis=0)                      # (8C, dt, H2, W2)
    xm = xm.reshape(8 * C, dt * H2 * W2)                      # (8C, tm) in-VMEM relayout
    y = jnp.dot(w_ref[...], xm, preferred_element_type=jnp.float32)
    y = y + b_ref[...]
    o_ref[...] = y.astype(o_ref.dtype)


def _matmul_kernel(x_ref, w_ref, b_ref, o_ref):
    """Plain 1x1x1-conv matmul (fallback path; input already space-to-depth'd).

    x_ref: (8C, tm)   w_ref: (2C, 8C)   b_ref: (2C, 1)   o_ref: (2C, tm)
    """
    y = jnp.dot(w_ref[...], x_ref[...], preferred_element_type=jnp.float32)
    o_ref[...] = (y + b_ref[...]).astype(o_ref.dtype)


# --------------------------------------------------------------------------
# helpers
# --------------------------------------------------------------------------
def _round_up(x, m):
    return ((x + m - 1) // m) * m


def _vmem_limit_bytes(*parts):
    # Explicit scoped-VMEM request: above v5e's 16 MiB default when needed,
    # comfortably below v7x's 64 MiB physical with the ~4 MiB block budget.
    need = sum(int(p) for p in parts)
    return int(min(96 * 2 ** 20, max(32 * 2 ** 20, need + 8 * 2 ** 20)))


# --------------------------------------------------------------------------
# wrappers
# --------------------------------------------------------------------------
def _patch_merging3d_fused(x, weight, bias, target_block_bytes=4 * 2 ** 20):
    B, C, D, H, W = x.shape
    D2, H2, W2 = D // 2, H // 2, W // 2
    C8 = 8 * C
    C2 = weight.shape[0]
    Mb = D2 * H2 * W2
    itemsize = jnp.dtype(x.dtype).itemsize

    # Free reshape: splits only the major D axis; (H, W) minor dims untouched.
    x5 = x.reshape(B, C, D2, 2, H, W)
    w2 = weight.reshape(C2, C8).astype(x.dtype)
    b2 = bias.reshape(C2, 1).astype(jnp.float32)

    # dt = output-depth slices per block; activation block = 8C*dt*H2*W2 elems.
    bytes_per_d2 = C8 * H2 * W2 * itemsize
    dt = int(max(1, min(D2, target_block_bytes // max(1, bytes_per_d2))))
    tm = dt * H2 * W2
    num_d = (D2 + dt - 1) // dt          # partial tail block, no padding

    in_block = C8 * tm * itemsize
    out_block = C2 * tm * itemsize
    const = C2 * C8 * itemsize + C2 * 4
    # 2x double-buffered in + ~2 in-block-sized temporaries for the in-kernel
    # deinterleave (concat/reshape materialise VMEM copies) + 2x out buffers.
    vmem_limit = _vmem_limit_bytes(4 * in_block, 2 * out_block, const)

    out = pl.pallas_call(
        _fused_kernel,
        out_shape=jax.ShapeDtypeStruct((B, C2, Mb), x.dtype),
        grid_spec=pltpu.PrefetchScalarGridSpec(
            num_scalar_prefetch=0,
            grid=(num_d, B),                                   # long axis first
            in_specs=[
                pl.BlockSpec((None, C, dt, 2, H, W),
                             lambda i, b: (b, 0, i, 0, 0, 0)),
                pl.BlockSpec((C2, C8), lambda i, b: (0, 0)),   # weight resident
                pl.BlockSpec((C2, 1), lambda i, b: (0, 0)),    # bias resident
            ],
            out_specs=pl.BlockSpec((None, C2, tm), lambda i, b: (b, 0, i)),
        ),
        compiler_params=pltpu.CompilerParams(
            dimension_semantics=("parallel", "parallel"),
            vmem_limit_bytes=vmem_limit),
    )(x5, w2, b2)
    # Last axis is already (D2, H2, W2) row-major flattened.
    return out.reshape(B, C2, D2, H2, W2)


def _patch_merging3d_glue(x, weight, bias, target_block_bytes=4 * 2 ** 20):
    """Fallback: XLA space-to-depth (one extra HBM pass) + matmul kernel."""
    B, C, D, H, W = x.shape
    D2, H2, W2 = D // 2, H // 2, W // 2
    C8 = 8 * C
    C2 = weight.shape[0]
    Mb = D2 * H2 * W2
    itemsize = jnp.dtype(x.dtype).itemsize

    x_r = x.reshape(B, C, D2, 2, H2, 2, W2, 2)
    x_r = jnp.transpose(x_r, (0, 3, 5, 7, 1, 2, 4, 6))  # (B, dd,hh,ww, C, D2,H2,W2)
    x_r = x_r.reshape(B, C8, Mb)
    w2 = weight.reshape(C2, C8).astype(x.dtype)
    b2 = bias.reshape(C2, 1).astype(jnp.float32)

    # Tile from a VMEM byte budget; partial tail block instead of pad/slice.
    tm = (target_block_bytes // max(1, C8 * itemsize)) // 128 * 128
    tm = int(max(128, min(tm, _round_up(Mb, 128))))
    num_m = (Mb + tm - 1) // tm

    in_block = C8 * tm * itemsize
    out_block = C2 * tm * itemsize
    const = C2 * C8 * itemsize + C2 * 4
    vmem_limit = _vmem_limit_bytes(2 * in_block, 2 * out_block, const)

    out = pl.pallas_call(
        _matmul_kernel,
        out_shape=jax.ShapeDtypeStruct((B, C2, Mb), x.dtype),
        grid_spec=pltpu.PrefetchScalarGridSpec(
            num_scalar_prefetch=0,
            grid=(num_m, B),
            in_specs=[
                pl.BlockSpec((None, C8, tm), lambda i, b: (b, 0, i)),
                pl.BlockSpec((C2, C8), lambda i, b: (0, 0)),
                pl.BlockSpec((C2, 1), lambda i, b: (0, 0)),
            ],
            out_specs=pl.BlockSpec((None, C2, tm), lambda i, b: (b, 0, i)),
        ),
        compiler_params=pltpu.CompilerParams(
            dimension_semantics=("parallel", "parallel"),
            vmem_limit_bytes=vmem_limit),
    )(x_r, w2, b2)
    return out.reshape(B, C2, D2, H2, W2)


def patch_merging3d(x, weight, bias):
    """x: (B, C, D, H, W). weight: (2C, 8C, 1, 1, 1). bias: (2C,).
    Returns (B, 2C, D//2, H//2, W//2), matching PatchMerging3D.forward.

    Tries the fused space-to-depth kernel first; falls back to the XLA-glue
    variant if the in-kernel deinterleave fails to lower (fallback only
    triggers on eager calls; under an outer jit, compile errors surface at
    jit-compile time)."""
    assert (x.shape[2] % 2 == 0 and x.shape[3] % 2 == 0 and x.shape[4] % 2 == 0), \
        "Input dimensions must be even"
    try:
        out = _patch_merging3d_fused(x, weight, bias)
        jax.block_until_ready(out)   # surface any lowering/runtime error here
        return out
    except Exception:
        # TODO(synk): in-kernel (2,2,2) strided deinterleave + (8C,dt,H2,W2)->
        # (8C,tm) reshape did not lower on this jax/Mosaic version; falling back
        # to the XLA space-to-depth glue (one extra HBM pass over the input slab).
        return _patch_merging3d_glue(x, weight, bias)


# --------------------------------------------------------------------------
# reference + test
# --------------------------------------------------------------------------
def _reference(x, weight, bias):
    """Pure-JAX transcription of the PyTorch forward, for verification."""
    parts = []
    for dd in range(2):
        for hh in range(2):
            for ww in range(2):
                parts.append(x[:, :, dd::2, hh::2, ww::2])
    x_cat = jnp.concatenate(parts, axis=1)                    # (B, 8C, D2, H2, W2)
    w = weight.reshape(weight.shape[0], weight.shape[1])      # (2C, 8C)
    y = jnp.einsum('oc,bcdhw->bodhw', w, x_cat)
    return y + bias.reshape(1, -1, 1, 1, 1)


if __name__ == "__main__":
    key = jax.random.PRNGKey(0)
    k1, k2, k3 = jax.random.split(key, 3)

    # Small shapes consistent with the module: in_channels=4 -> out channels 8.
    B, C, D, H, W = 2, 4, 16, 16, 16
    x = jax.random.normal(k1, (B, C, D, H, W), dtype=jnp.float32)
    # nn.Conv3d(8C, 2C, kernel_size=1) weight: (2C, 8C, 1, 1, 1), bias: (2C,)
    weight = 0.1 * jax.random.normal(k2, (2 * C, 8 * C, 1, 1, 1), dtype=jnp.float32)
    bias = 0.1 * jax.random.normal(k3, (2 * C,), dtype=jnp.float32)

    out = patch_merging3d(x, weight, bias)
    out = jax.block_until_ready(out)

    ref = _reference(x, weight, bias)
    assert out.shape == (B, 2 * C, D // 2, H // 2, W // 2), out.shape
    assert jnp.allclose(out, ref, atol=1e-4, rtol=1e-4), "mismatch vs reference"

    print("KERNEL_OK")
</pallas_src>

<mosaic_0001>
module attributes {stable_mosaic.version = 11 : i64} {
  func.func @_fused_kernel(%arg0: i32, %arg1: i32, %arg2: memref<1x4x8x2x16x16xf32, #tpu.memory_space<vmem>>, %arg3: memref<8x32xf32, #tpu.memory_space<vmem>>, %arg4: memref<8x1xf32, #tpu.memory_space<vmem>>, %arg5: memref<1x8x512xf32, #tpu.memory_space<vmem>>) attributes {dimension_semantics = [#tpu.dimension_semantics<parallel>, #tpu.dimension_semantics<parallel>], iteration_bounds = array<i64: 1, 2>, scalar_prefetch = 0 : i64, scratch_operands = 0 : i64, tpu.core_type = #tpu.core_type<tc>, window_params = [{transform_indices = @transform_0, window_bounds = array<i64: 1, 4, 8, 2, 16, 16>}, {pipeline_mode = #tpu.pipeline_mode<synchronous>, transform_indices = @transform_1, window_bounds = array<i64: 8, 32>}, {pipeline_mode = #tpu.pipeline_mode<synchronous>, transform_indices = @transform_2, window_bounds = array<i64: 8, 1>}, {transform_indices = @transform_3, window_bounds = array<i64: 1, 8, 512>}]} {
    %c0 = arith.constant 0 : index
    %c0_0 = arith.constant 0 : index
    %c0_1 = arith.constant 0 : index
    %c0_2 = arith.constant 0 : index
    %c0_3 = arith.constant 0 : index
    %c0_4 = arith.constant 0 : index
    %0 = tpu.strided_load %arg2[%c0, %c0_0, %c0_1, %c0_2, %c0_3, %c0_4] {strides = array<i32: 1, 1, 1, 1, 2, 2>} : memref<1x4x8x2x16x16xf32, #tpu.memory_space<vmem>>, vector<1x4x8x1x8x8xf32>
    %1 = vector.shape_cast %0 : vector<1x4x8x1x8x8xf32> to vector<4x8x8x8xf32>
    %c0_5 = arith.constant 0 : index
    %c0_6 = arith.constant 0 : index
    %c0_7 = arith.constant 0 : index
    %c0_8 = arith.constant 0 : index
    %c0_9 = arith.constant 0 : index
    %c1 = arith.constant 1 : index
    %2 = tpu.strided_load %arg2[%c0_5, %c0_6, %c0_7, %c0_8, %c0_9, %c1] {strides = array<i32: 1, 1, 1, 1, 2, 2>} : memref<1x4x8x2x16x16xf32, #tpu.memory_space<vmem>>, vector<1x4x8x1x8x8xf32>
    %3 = vector.shape_cast %2 : vector<1x4x8x1x8x8xf32> to vector<4x8x8x8xf32>
    %c0_10 = arith.constant 0 : index
    %c0_11 = arith.constant 0 : index
    %c0_12 = arith.constant 0 : index
    %c0_13 = arith.constant 0 : index
    %c1_14 = arith.constant 1 : index
    %c0_15 = arith.constant 0 : index
    %4 = tpu.strided_load %arg2[%c0_10, %c0_11, %c0_12, %c0_13, %c1_14, %c0_15] {strides = array<i32: 1, 1, 1, 1, 2, 2>} : memref<1x4x8x2x16x16xf32, #tpu.memory_space<vmem>>, vector<1x4x8x1x8x8xf32>
    %5 = vector.shape_cast %4 : vector<1x4x8x1x8x8xf32> to vector<4x8x8x8xf32>
    %c0_16 = arith.constant 0 : index
    %c0_17 = arith.constant 0 : index
    %c0_18 = arith.constant 0 : index
    %c0_19 = arith.constant 0 : index
    %c1_20 = arith.constant 1 : index
    %c1_21 = arith.constant 1 : index
    %6 = tpu.strided_load %arg2[%c0_16, %c0_17, %c0_18, %c0_19, %c1_20, %c1_21] {strides = array<i32: 1, 1, 1, 1, 2, 2>} : memref<1x4x8x2x16x16xf32, #tpu.memory_space<vmem>>, vector<1x4x8x1x8x8xf32>
    %7 = vector.shape_cast %6 : vector<1x4x8x1x8x8xf32> to vector<4x8x8x8xf32>
    %c0_22 = arith.constant 0 : index
    %c0_23 = arith.constant 0 : index
    %c0_24 = arith.constant 0 : index
    %c1_25 = arith.constant 1 : index
    %c0_26 = arith.constant 0 : index
    %c0_27 = arith.constant 0 : index
    %8 = tpu.strided_load %arg2[%c0_22, %c0_23, %c0_24, %c1_25, %c0_26, %c0_27] {strides = array<i32: 1, 1, 1, 1, 2, 2>} : memref<1x4x8x2x16x16xf32, #tpu.memory_space<vmem>>, vector<1x4x8x1x8x8xf32>
    %9 = vector.shape_cast %8 : vector<1x4x8x1x8x8xf32> to vector<4x8x8x8xf32>
    %c0_28 = arith.constant 0 : index
    %c0_29 = arith.constant 0 : index
    %c0_30 = arith.constant 0 : index
    %c1_31 = arith.constant 1 : index
    %c0_32 = arith.constant 0 : index
    %c1_33 = arith.constant 1 : index
    %10 = tpu.strided_load %arg2[%c0_28, %c0_29, %c0_30, %c1_31, %c0_32, %c1_33] {strides = array<i32: 1, 1, 1, 1, 2, 2>} : memref<1x4x8x2x16x16xf32, #tpu.memory_space<vmem>>, vector<1x4x8x1x8x8xf32>
    %11 = vector.shape_cast %10 : vector<1x4x8x1x8x8xf32> to vector<4x8x8x8xf32>
    %c0_34 = arith.constant 0 : index
    %c0_35 = arith.constant 0 : index
    %c0_36 = arith.constant 0 : index
    %c1_37 = arith.constant 1 : index
    %c1_38 = arith.constant 1 : index
    %c0_39 = arith.constant 0 : index
    %12 = tpu.strided_load %arg2[%c0_34, %c0_35, %c0_36, %c1_37, %c1_38, %c0_39] {strides = array<i32: 1, 1, 1, 1, 2, 2>} : memref<1x4x8x2x16x16xf32, #tpu.memory_space<vmem>>, vector<1x4x8x1x8x8xf32>
    %13 = vector.shape_cast %12 : vector<1x4x8x1x8x8xf32> to vector<4x8x8x8xf32>
    %c0_40 = arith.constant 0 : index
    %c0_41 = arith.constant 0 : index
    %c0_42 = arith.constant 0 : index
    %c1_43 = arith.constant 1 : index
    %c1_44 = arith.constant 1 : index
    %c1_45 = arith.constant 1 : index
    %14 = tpu.strided_load %arg2[%c0_40, %c0_41, %c0_42, %c1_43, %c1_44, %c1_45] {strides = array<i32: 1, 1, 1, 1, 2, 2>} : memref<1x4x8x2x16x16xf32, #tpu.memory_space<vmem>>, vector<1x4x8x1x8x8xf32>
    %15 = vector.shape_cast %14 : vector<1x4x8x1x8x8xf32> to vector<4x8x8x8xf32>
    %16 = tpu.concatenate %1, %3, %5, %7, %9, %11, %13, %15 in 0 : vector<4x8x8x8xf32>, vector<4x8x8x8xf32>, vector<4x8x8x8xf32>, vector<4x8x8x8xf32>, vector<4x8x8x8xf32>, vector<4x8x8x8xf32>, vector<4x8x8x8xf32>, vector<4x8x8x8xf32> -> vector<32x8x8x8xf32>
    %17 = vector.shape_cast %16 : vector<32x8x8x8xf32> to vector<32x512xf32>
    %c0_46 = arith.constant 0 : index
    %c0_47 = arith.constant 0 : index
    %18 = vector.load %arg3[%c0_46, %c0_47] : memref<8x32xf32, #tpu.memory_space<vmem>>, vector<8x32xf32>
    %cst = arith.constant dense<0.000000e+00> : vector<8x512xf32>
    %19 = tpu.matmul %18, %17, %cst {dimension_numbers = #tpu.dot_dimension_numbers<[1], [0], [0], [1], [0, 0, 1, 1], [], []>} : vector<8x32xf32>, vector<32x512xf32>, vector<8x512xf32> -> vector<8x512xf32>
    %c0_48 = arith.constant 0 : index
    %c0_49 = arith.constant 0 : index
    %20 = vector.load %arg4[%c0_48, %c0_49] : memref<8x1xf32, #tpu.memory_space<vmem>>, vector<8x1xf32>
    %21 = vector.broadcast %20 : vector<8x1xf32> to vector<8x512xf32>
    %22 = arith.addf %19, %21 : vector<8x512xf32>
    %c0_50 = arith.constant 0 : index
    %c0_51 = arith.constant 0 : index
    %c0_52 = arith.constant 0 : index
    %23 = vector.load %arg5[%c0_50, %c0_51, %c0_52] : memref<1x8x512xf32, #tpu.memory_space<vmem>>, vector<1x8x512xf32>
    %24 = vector.shape_cast %23 : vector<1x8x512xf32> to vector<8x512xf32>
    %25 = vector.shape_cast %22 : vector<8x512xf32> to vector<1x8x512xf32>
    tpu.vector_store %arg5[%c0_50, %c0_51, %c0_52], %25 {strides = array<i32>} : memref<1x8x512xf32, #tpu.memory_space<vmem>>, vector<1x8x512xf32>,
    return
  }
  func.func @transform_0(%arg0: i32, %arg1: i32) -> (i32, i32, i32, i32, i32, i32) {
    %c0_i32 = arith.constant 0 : i32
    %c0_i32_0 = arith.constant 0 : i32
    %c0_i32_1 = arith.constant 0 : i32
    %c0_i32_2 = arith.constant 0 : i32
    %c0_i32_3 = arith.constant 0 : i32
    return %arg1, %c0_i32, %arg0, %c0_i32_0, %c0_i32_1, %c0_i32_2 : i32, i32, i32, i32, i32, i32
  }
  func.func @transform_1(%arg0: i32, %arg1: i32) -> (i32, i32) {
    %c0_i32 = arith.constant 0 : i32
    %c0_i32_0 = arith.constant 0 : i32
    %c0_i32_1 = arith.constant 0 : i32
    return %c0_i32, %c0_i32_0 : i32, i32
  }
  func.func @transform_2(%arg0: i32, %arg1: i32) -> (i32, i32) {
    %c0_i32 = arith.constant 0 : i32
    %c0_i32_0 = arith.constant 0 : i32
    %c0_i32_1 = arith.constant 0 : i32
    return %c0_i32, %c0_i32_0 : i32, i32
  }
  func.func @transform_3(%arg0: i32, %arg1: i32) -> (i32, i32, i32) {
    %c0_i32 = arith.constant 0 : i32
    %c0_i32_0 = arith.constant 0 : i32
    return %arg1, %c0_i32, %arg0 : i32, i32, i32
  }
}

module attributes {stable_mosaic.version = 11 : i64} {
  func.func @_matmul_kernel(%arg0: i32, %arg1: i32, %arg2: memref<1x32x512xf32, #tpu.memory_space<vmem>>, %arg3: memref<8x32xf32, #tpu.memory_space<vmem>>, %arg4: memref<8x1xf32, #tpu.memory_space<vmem>>, %arg5: memref<1x8x512xf32, #tpu.memory_space<vmem>>) attributes {dimension_semantics = [#tpu.dimension_semantics<parallel>, #tpu.dimension_semantics<parallel>], iteration_bounds = array<i64: 1, 2>, scalar_prefetch = 0 : i64, scratch_operands = 0 : i64, tpu.core_type = #tpu.core_type<tc>, window_params = [{transform_indices = @transform_0, window_bounds = array<i64: 1, 32, 512>}, {pipeline_mode = #tpu.pipeline_mode<synchronous>, transform_indices = @transform_1, window_bounds = array<i64: 8, 32>}, {pipeline_mode = #tpu.pipeline_mode<synchronous>, transform_indices = @transform_2, window_bounds = array<i64: 8, 1>}, {transform_indices = @transform_3, window_bounds = array<i64: 1, 8, 512>}]} {
    %c0 = arith.constant 0 : index
    %c0_0 = arith.constant 0 : index
    %0 = vector.load %arg3[%c0, %c0_0] : memref<8x32xf32, #tpu.memory_space<vmem>>, vector<8x32xf32>
    %c0_1 = arith.constant 0 : index
    %c0_2 = arith.constant 0 : index
    %c0_3 = arith.constant 0 : index
    %1 = vector.load %arg2[%c0_1, %c0_2, %c0_3] : memref<1x32x512xf32, #tpu.memory_space<vmem>>, vector<1x32x512xf32>
    %2 = vector.shape_cast %1 : vector<1x32x512xf32> to vector<32x512xf32>
    %cst = arith.constant dense<0.000000e+00> : vector<8x512xf32>
    %3 = tpu.matmul %0, %2, %cst {dimension_numbers = #tpu.dot_dimension_numbers<[1], [0], [0], [1], [0, 0, 1, 1], [], []>} : vector<8x32xf32>, vector<32x512xf32>, vector<8x512xf32> -> vector<8x512xf32>
    %c0_4 = arith.constant 0 : index
    %c0_5 = arith.constant 0 : index
    %4 = vector.load %arg4[%c0_4, %c0_5] : memref<8x1xf32, #tpu.memory_space<vmem>>, vector<8x1xf32>
    %5 = vector.broadcast %4 : vector<8x1xf32> to vector<8x512xf32>
    %6 = arith.addf %3, %5 : vector<8x512xf32>
    %c0_6 = arith.constant 0 : index
    %c0_7 = arith.constant 0 : index
    %c0_8 = arith.constant 0 : index
    %7 = vector.load %arg5[%c0_6, %c0_7, %c0_8] : memref<1x8x512xf32, #tpu.memory_space<vmem>>, vector<1x8x512xf32>
    %8 = vector.shape_cast %7 : vector<1x8x512xf32> to vector<8x512xf32>
    %9 = vector.shape_cast %6 : vector<8x512xf32> to vector<1x8x512xf32>
    tpu.vector_store %arg5[%c0_6, %c0_7, %c0_8], %9 {strides = array<i32>} : memref<1x8x512xf32, #tpu.memory_space<vmem>>, vector<1x8x512xf32>,
    return
  }
  func.func @transform_0(%arg0: i32, %arg1: i32) -> (i32, i32, i32) {
    %c0_i32 = arith.constant 0 : i32
    %c0_i32_0 = arith.constant 0 : i32
    return %arg1, %c0_i32, %arg0 : i32, i32, i32
  }
  func.func @transform_1(%arg0: i32, %arg1: i32) -> (i32, i32) {
    %c0_i32 = arith.constant 0 : i32
    %c0_i32_0 = arith.constant 0 : i32
    %c0_i32_1 = arith.constant 0 : i32
    return %c0_i32, %c0_i32_0 : i32, i32
  }
  func.func @transform_2(%arg0: i32, %arg1: i32) -> (i32, i32) {
    %c0_i32 = arith.constant 0 : i32
    %c0_i32_0 = arith.constant 0 : i32
    %c0_i32_1 = arith.constant 0 : i32
    return %c0_i32, %c0_i32_0 : i32, i32
  }
  func.func @transform_3(%arg0: i32, %arg1: i32) -> (i32, i32, i32) {
    %c0_i32 = arith.constant 0 : i32
    %c0_i32_0 = arith.constant 0 : i32
    return %arg1, %c0_i32, %arg0 : i32, i32, i32
  }
}

</mosaic_0001>

<llo_original>
// kernel: tpu_custom_call.1
$region0: #{tpu_custom_call.1}
  #allocation0 [shape = 'u32[]', space=smem, size = 0x4, offset = 0x4, fixed_abs, tag = 'smem constant byte address 0x4 - core index']
  #allocation1 [shape = 'u32[144,128]{1,0:T(1,128)}', space=vmem, size = 0x12000, scoped, tag = 'internal scratch']
  %s0 = inlined_call_operand.hbm [shape: f32[2,32,512], index: 0, kind: input, shape index: {}]
  %s1 = inlined_call_operand.vmem [shape: f32[8,32], index: 1, kind: input, shape index: {}]
  %s2 = inlined_call_operand.vmem [shape: f32[8,1], index: 2, kind: input, shape index: {}]
  %s3 = inlined_call_operand.hbm [shape: f32[2,8,512], index: 3, kind: output, shape index: {}]
  %s4 = sld [smem:[#allocation0]]
  $region49: #{tpu_custom_call.1} parent=0
    _
  %s6 = ssub.s32 1, %s4
  %s7 = scalar_select 0, %s6, %s4
  $region1: #{tpu_custom_call.1} parent=0
    #allocation2 [shape = 'u8[131072]{0}', space=vmem, size = 0x20000, scoped, tag = 'input window, operand 0']
    #allocation3 [shape = 's32[2]{0}', space=sflag, size = 0x8, scoped, tag = 'scoped memory for tpu_custom_call.1']
    #allocation4 [shape = 's32[2]{0}', space=sflag, size = 0x8, scoped, tag = 'scoped memory for tpu_custom_call.1']
    #allocation5 [shape = 'u8[32768]{0}', space=vmem, size = 0x8000, scoped, tag = 'output window, operand 0']
    %8 = vsyncpa [#allocation3], 0
    %s9 = scalar_lea.sflag [#allocation3], 1
    %10 = vsyncpa %s9, 0
    %11 = vsyncpa [#allocation4], 0
    %s12 = scalar_lea.sflag [#allocation4], 1
    %13 = vsyncpa %s12, 0
    loop: start=0, step=1, limit=4
    $region2: #{tpu_custom_call.1} parent=1 // loop_pre_header
      _
    $region3: #{tpu_custom_call.1} parent=1 // loop_header
      %s15 = sphi 0, %s19
      %p16 = scmp.ge.s32.totalorder %s15, 4
      %s22 = sphi 0, %s34
      %s23 = sphi 0, %s30
      %s24 = sphi 0, %s22
      %s25 = sphi 0, %s23
      %s26 = sphi 0, %s24
      %s27 = sphi 0, %s25
      %s39 = sphi 0, %s41
      %s42 = sphi 0, %s39
      %s43 = sphi 0, %s42
      %s59 = sphi 0, %s43
      %s63 = sphi 0, %s63
      %s65 = sphi 0, %s63
      %s66 = sphi 0, %s65
      %s80 = sphi 0, %s66
      %s84 = sphi 0, %s84
      %s86 = sphi 0, %s84
      %s87 = sphi 0, %s86
      %s101 = sphi 0, %s87
      %s109 = sphi 0, %s111
      %s112 = sphi 0, %s109
      %s113 = sphi 0, %s112
      %s129 = sphi 0, %s113
    $region4: #{tpu_custom_call.1} parent=1 // loop_header_branch
      %18 = sbr.rel (%p16) target = $region8
    $region5: #{tpu_custom_call.1} parent=1 // loop_body
      %s20 = ssub.s32 %s15, 1
      %s21 = ssub.s32 %s15, 2
      %s28 = sadd.s32 1, %s23
      %p29 = scmp.ge.s32.totalorder %s28, 2
      %s30 = scalar_select %p29, 0, %s28
      %s31 = sadd.s32 1, %s22
      %s32 = scalar_select %p29, %s31, %s22
      %p33 = scmp.ge.s32.totalorder %s32, 1
      %s34 = scalar_select %p33, 0, %s32
      %s35 = ssub.s32 %s23, %s30
      %s36 = ssub.s32 %s22, %s34
      %s37 = sor.u32 %s35, %s36
      %p38 = scmp.eq.s32.totalorder %s37, 0
      %s40 = sadd.s32 %s39, 1
      %s41 = scalar_select %p38, %s39, %s40
      %p44 = pneg %p38
      %p45 = scmp.eq.s32.totalorder %s15, 1
      %p46 = por %p44, %p45
      %p47 = scmp.ne.s32.totalorder %s39, %s42
      %p48 = scmp.eq.s32.totalorder %s15, 0
      %p49 = por %p47, %p48
      %p50 = scmp.ne.s32.totalorder %s39, %s42
      %p51 = scmp.eq.s32.totalorder %s20, 1
      %p52 = por %p50, %p51
      %p53 = scmp.ne.s32.totalorder %s42, %s43
      %p54 = scmp.eq.s32.totalorder %s20, 0
      %p55 = por %p53, %p54
      %p56 = scmp.ne.s32.totalorder %s42, %s43
      %p57 = scmp.eq.s32.totalorder %s21, 1
      %p58 = por %p56, %p57
      %p60 = scmp.ne.s32.totalorder %s43, %s59
      %p61 = scmp.eq.s32.totalorder %s21, 0
      %p62 = por %p60, %p61
      %s64 = sadd.s32 %s63, 1
      %p67 = scmp.eq.s32.totalorder %s15, 1
      %p68 = scmp.ne.s32.totalorder %s63, %s65
      %p69 = scmp.eq.s32.totalorder %s15, 0
      %p70 = por %p68, %p69
      %p71 = scmp.ne.s32.totalorder %s63, %s65
      %p72 = scmp.eq.s32.totalorder %s20, 1
      %p73 = por %p71, %p72
      %p74 = scmp.ne.s32.totalorder %s65, %s66
      %p75 = scmp.eq.s32.totalorder %s20, 0
      %p76 = por %p74, %p75
      %p77 = scmp.ne.s32.totalorder %s65, %s66
      %p78 = scmp.eq.s32.totalorder %s21, 1
      %p79 = por %p77, %p78
      %p81 = scmp.ne.s32.totalorder %s66, %s80
      %p82 = scmp.eq.s32.totalorder %s21, 0
      %p83 = por %p81, %p82
      %s85 = sadd.s32 %s84, 1
      %p88 = scmp.eq.s32.totalorder %s15, 1
      %p89 = scmp.ne.s32.totalorder %s84, %s86
      %p90 = scmp.eq.s32.totalorder %s15, 0
      %p91 = por %p89, %p90
      %p92 = scmp.ne.s32.totalorder %s84, %s86
      %p93 = scmp.eq.s32.totalorder %s20, 1
      %p94 = por %p92, %p93
      %p95 = scmp.ne.s32.totalorder %s86, %s87
      %p96 = scmp.eq.s32.totalorder %s20, 0
      %p97 = por %p95, %p96
      %p98 = scmp.ne.s32.totalorder %s86, %s87
      %p99 = scmp.eq.s32.totalorder %s21, 1
      %p100 = por %p98, %p99
      %p102 = scmp.ne.s32.totalorder %s87, %s101
      %p103 = scmp.eq.s32.totalorder %s21, 0
      %p104 = por %p102, %p103
      %s105 = ssub.s32 %s23, %s30
      %s106 = ssub.s32 %s22, %s34
      %s107 = sor.u32 %s105, %s106
      %p108 = scmp.eq.s32.totalorder %s107, 0
      %s110 = sadd.s32 %s109, 1
      %s111 = scalar_select %p108, %s109, %s110
      %p114 = pneg %p108
      %p115 = scmp.eq.s32.totalorder %s15, 1
      %p116 = por %p114, %p115
      %p117 = scmp.ne.s32.totalorder %s109, %s112
      %p118 = scmp.eq.s32.totalorder %s15, 0
      %p119 = por %p117, %p118
      %p120 = scmp.ne.s32.totalorder %s109, %s112
      %p121 = scmp.eq.s32.totalorder %s20, 1
      %p122 = por %p120, %p121
      %p123 = scmp.ne.s32.totalorder %s112, %s113
      %p124 = scmp.eq.s32.totalorder %s20, 0
      %p125 = por %p123, %p124
      %p126 = scmp.ne.s32.totalorder %s112, %s113
      %p127 = scmp.eq.s32.totalorder %s21, 1
      %p128 = por %p126, %p127
      %p130 = scmp.ne.s32.totalorder %s113, %s129
      %p131 = scmp.eq.s32.totalorder %s21, 0
      %p132 = por %p130, %p131
      %p133 = scmp.le.s32.totalorder 1, %s15
      %p134 = scmp.lt.s32.totalorder %s15, 3
      %p135 = pnand %p133, %p134
      %p136 = pneg %p135
      // Predicated region
      $region9: #{tpu_custom_call.1} parent=5 // pred_check
        _
      $region10: #{tpu_custom_call.1} parent=5 // pred_check_branch
        %138 = sbr.rel (%p135) target = $region12
      $region11: #{tpu_custom_call.1} parent=5 // pred_region
        %s139 = ssub.s32 %s15, 1
        // Predicated region
        $region13: #{tpu_custom_call.1} parent=11 // pred_check
          %p140 = pneg %p76
        $region14: #{tpu_custom_call.1} parent=11 // pred_check_branch
          %142 = sbr.rel (%p140) target = $region16
        $region15: #{tpu_custom_call.1} parent=11 // pred_region
          _
        $region16: #{tpu_custom_call.1} parent=11 // pred_fallthru
          _
        // Predicated region
        $region17: #{tpu_custom_call.1} parent=11 // pred_check
          %p143 = pneg %p97
        $region18: #{tpu_custom_call.1} parent=11 // pred_check_branch
          %145 = sbr.rel (%p143) target = $region20
        $region19: #{tpu_custom_call.1} parent=11 // pred_region
          _
        $region20: #{tpu_custom_call.1} parent=11 // pred_fallthru
          _
      $region12: #{tpu_custom_call.1} parent=5 // pred_fallthru
        _
      %p146 = scmp.lt.s32.totalorder %s15, 2
      // Predicated region
      $region21: #{tpu_custom_call.1} parent=5 // pred_check
        %p147 = pneg %p146
      $region22: #{tpu_custom_call.1} parent=5 // pred_check_branch
        %149 = sbr.rel (%p147) target = $region24
      $region23: #{tpu_custom_call.1} parent=5 // pred_region
        // Predicated region
        $region25: #{tpu_custom_call.1} parent=23 // pred_check
          %p150 = pneg %p49
        $region26: #{tpu_custom_call.1} parent=23 // pred_check_branch
          %152 = sbr.rel (%p150) target = $region28
        $region27: #{tpu_custom_call.1} parent=23 // pred_region
          %s153 = sand.u32 %s39, 1
          %s154 = scalar_lea.sflag [#allocation3], %s153
          %s155 = sand.u32 %s39, 1
          %s156 = smul.addr %s155, 128
          %s157 = scalar_lea.vmem [#allocation2], %s156
          %s158 = smul.u32 4, %s22
          %s160 = ssub.s32 2048, 2048
          %161 = vsyncadd %s154, %s160
          %s162 = smul.addr %s23, 16
          %s163 = sadd.s32 %s158, %s162
          %s164 = smul.addr %s163, 128
          %s165 = scalar_lea.hbm %s0, %s164
          %s166 = sshll.u32 %s157, 4
          %s167 = int_to_ptr.vmem [resolvable:$true] %s166
          %172 = dma.hbm_to_vmem [thread:$0]  %s165, 2048, %s167, %s154, 512, 512, 32
        $region28: #{tpu_custom_call.1} parent=23 // pred_fallthru
          _
      $region24: #{tpu_custom_call.1} parent=5 // pred_fallthru
        _
      %p173 = scmp.le.s32.totalorder 1, %s15
      %p174 = scmp.lt.s32.totalorder %s15, 3
      %p175 = pnand %p173, %p174
      %p176 = pneg %p175
      // Predicated region
      $region29: #{tpu_custom_call.1} parent=5 // pred_check
        _
      $region30: #{tpu_custom_call.1} parent=5 // pred_check_branch
        %178 = sbr.rel (%p175) target = $region32
      $region31: #{tpu_custom_call.1} parent=5 // pred_region
        %s179 = ssub.s32 %s15, 1
        %s180 = sand.u32 %s42, 1
        %s181 = scalar_lea.sflag [#allocation3], %s180
        %s182 = sand.u32 %s42, 1
        %s183 = smul.addr %s182, 128
        %s184 = scalar_lea.vmem [#allocation2], %s183
        // Predicated region
        $region33: #{tpu_custom_call.1} parent=31 // pred_check
          %p185 = pneg %p55
        $region34: #{tpu_custom_call.1} parent=31 // pred_check_branch
          %187 = sbr.rel (%p185) target = $region36
        $region35: #{tpu_custom_call.1} parent=31 // pred_region
          %188 = dma.done %s181, 2048
        $region36: #{tpu_custom_call.1} parent=31 // pred_fallthru
          _
        %s189 = sand.u32 %s42, 1
        %s190 = scalar_lea.sflag [#allocation3], %s189
        %s191 = sand.u32 %s42, 1
        %s192 = smul.addr %s191, 128
        %s193 = scalar_lea.vmem [#allocation2], %s192
        %p194 = pneg %p55
        %p195 = pneg %p52
        %p196 = pneg %p76
        %p197 = pneg %p73
        %p198 = pneg %p97
        %p199 = pneg %p94
        %p200 = pneg %p125
        %p201 = pneg %p122
        %s202 = sand.u32 %s112, 1
        %s203 = scalar_lea.sflag [#allocation4], %s202
        %s204 = sand.u32 %s112, 1
        %s205 = smul.addr %s204, 32
        %s206 = scalar_lea.vmem [#allocation5], %s205
        %s207 = smul.u32 4, %s24
        %s208 = smul.u32 4, %s24
        %v209 = vld [vmem:[%s1] sm:$0xff]
        %v210 = vld [vmem:[%s184] sm:$0xff]
        %v211 = vld [vmem:[%s184 + $0x8] sm:$0xff]
        %v212 = vld [vmem:[%s184 + $0x10] sm:$0xff]
        %v213 = vld [vmem:[%s184 + $0x18] sm:$0xff]
        %v214 = vld [vmem:[%s184 + $0x20] sm:$0xff]
        %v215 = vld [vmem:[%s184 + $0x28] sm:$0xff]
        %v216 = vld [vmem:[%s184 + $0x30] sm:$0xff]
        %v217 = vld [vmem:[%s184 + $0x38] sm:$0xff]
        %v218 = vld [vmem:[%s184 + $0x40] sm:$0xff]
        %v219 = vld [vmem:[%s184 + $0x48] sm:$0xff]
        %v220 = vld [vmem:[%s184 + $0x50] sm:$0xff]
        %v221 = vld [vmem:[%s184 + $0x58] sm:$0xff]
        %v222 = vld [vmem:[%s184 + $0x60] sm:$0xff]
        %v223 = vld [vmem:[%s184 + $0x68] sm:$0xff]
        %v224 = vld [vmem:[%s184 + $0x70] sm:$0xff]
        %v225 = vld [vmem:[%s184 + $0x78] sm:$0xff]
        %v226 = vld [vmem:[%s2] sm:$0xff]
        %228 = vset.pattern.permute.xlu0 0
        %229 = vperm.xlu0 %228, %v226
        %v230 = vpop.permute.xlu0 %229
        %vm232 = vcmask 261120
        %v234 = vsel %vm232, %v209, 0
        %236 = vmatprep.subr.mxu0 %v211
        %237 = vmatpush1.msra.mxu0 %v210
        %238 = vmatprep.subr.mxu0 %v215
        %239 = vmatpush1.msra.mxu0 %v214
        %240 = vmatprep.subr.mxu0 %v219
        %241 = vmatpush1.msra.mxu0 %v218
        %242 = vmatprep.subr.mxu0 %v223
        %243 = vmatpush1.msra.mxu0 %v222
        %244 = vmatprep.subr.mxu0 0.0
        %245 = vmatpush1.msra.mxu0 0.0
        %246 = vmatprep.subr.mxu0 0.0
        %247 = vmatpush1.msra.mxu0 0.0
        %248 = vmatprep.subr.mxu0 0.0
        %249 = vmatpush1.msra.mxu0 0.0
        %250 = vmatprep.subr.mxu0 0.0
        %251 = vmatpush1.msra.mxu0 0.0
        %252 = vmatprep.subr.mxu0 0.0
        %253 = vmatpush1.msra.mxu0 0.0
        %254 = vmatprep.subr.mxu0 0.0
        %255 = vmatpush1.msra.mxu0 0.0
        %256 = vmatprep.subr.mxu0 0.0
        %257 = vmatpush1.msra.mxu0 0.0
        %258 = vmatprep.subr.mxu0 0.0
        %259 = vmatpush1.msra.mxu0 0.0
        %260 = vmatprep.subr.mxu0 0.0
        %261 = vmatpush1.msra.mxu0 0.0
        %262 = vmatprep.subr.mxu0 0.0
        %263 = vmatpush1.msra.mxu0 0.0
        %264 = vmatprep.subr.mxu0 0.0
        %265 = vmatpush1.msra.mxu0 0.0
        %266 = vmatprep.subr.mxu0 0.0
        %267 = vmatpush1.msra.mxu0 0.0
        %268 = vmatprep.subr.mxu0 0.0
        %269 = vmatpush1.msra.mxu0 0.0
        %270 = vmatprep.subr.mxu0 0.0
        %271 = vmatpush1.msra.mxu0 0.0
        %272 = vmatprep.subr.mxu0 0.0
        %273 = vmatpush1.msra.mxu0 0.0
        %274 = vmatprep.subr.mxu0 0.0
        %275 = vmatpush1.msra.mxu0 0.0
        %276 = vmatprep.subr.mxu0 0.0
        %277 = vmatpush1.msra.mxu0 0.0
        %278 = vmatprep.subr.mxu0 0.0
        %279 = vmatpush1.msra.mxu0 0.0
        %280 = vmatprep.subr.mxu0 0.0
        %281 = vmatpush1.msra.mxu0 0.0
        %282 = vmatprep.subr.mxu0 0.0
        %283 = vmatpush1.msra.mxu0 0.0
        %284 = vmatprep.subr.mxu0 0.0
        %285 = vmatpush1.msra.mxu0 0.0
        %286 = vmatprep.subr.mxu0 0.0
        %287 = vmatpush1.msra.mxu0 0.0
        %288 = vmatprep.subr.mxu0 0.0
        %289 = vmatpush1.msra.mxu0 0.0
        %290 = vmatprep.subr.mxu0 0.0
        %291 = vmatpush1.msra.mxu0 0.0
        %292 = vmatprep.subr.mxu0 0.0
        %293 = vmatpush1.msra.mxu0 0.0
        %294 = vmatprep.subr.mxu0 0.0
        %295 = vmatpush1.msra.mxu0 0.0
        %296 = vmatprep.subr.mxu0 0.0
        %297 = vmatpush1.msra.mxu0 0.0
        %298 = vmatprep.subr.mxu0 0.0
        %299 = vmatpush1.msra.mxu0 0.0
        %300 = vmatprep.mubr.f32.mxu0 0.0
        %301 = vmatmul.mubr.f32.gmra.mrb[0].mxu0 %v234
        %v302 = vpop.f32.mrb[0].mxu0
        %v303 = vadd.f32 %v230, %v302
        %v304 = vpop.f32.mrb[0].mxu0
        %v305 = vadd.f32 %v230, %v304
        %306 = vdwg.mxu0
        %307 = vmatprep.subr.mxu0 %v213
        %308 = vmatpush1.msra.mxu0 %v212
        %309 = vmatprep.subr.mxu0 %v217
        %310 = vmatpush1.msra.mxu0 %v216
        %311 = vmatprep.subr.mxu0 %v221
        %312 = vmatpush1.msra.mxu0 %v220
        %313 = vmatprep.subr.mxu0 %v225
        %314 = vmatpush1.msra.mxu0 %v224
        %315 = vmatprep.subr.mxu0 0.0
        %316 = vmatpush1.msra.mxu0 0.0
        %317 = vmatprep.subr.mxu0 0.0
        %318 = vmatpush1.msra.mxu0 0.0
        %319 = vmatprep.subr.mxu0 0.0
        %320 = vmatpush1.msra.mxu0 0.0
        %321 = vmatprep.subr.mxu0 0.0
        %322 = vmatpush1.msra.mxu0 0.0
        %323 = vmatprep.subr.mxu0 0.0
        %324 = vmatpush1.msra.mxu0 0.0
        %325 = vmatprep.subr.mxu0 0.0
        %326 = vmatpush1.msra.mxu0 0.0
        %327 = vmatprep.subr.mxu0 0.0
        %328 = vmatpush1.msra.mxu0 0.0
        %329 = vmatprep.subr.mxu0 0.0
        %330 = vmatpush1.msra.mxu0 0.0
        %331 = vmatprep.subr.mxu0 0.0
        %332 = vmatpush1.msra.mxu0 0.0
        %333 = vmatprep.subr.mxu0 0.0
        %334 = vmatpush1.msra.mxu0 0.0
        %335 = vmatprep.subr.mxu0 0.0
        %336 = vmatpush1.msra.mxu0 0.0
        %337 = vmatprep.subr.mxu0 0.0
        %338 = vmatpush1.msra.mxu0 0.0
        %339 = vmatprep.subr.mxu0 0.0
        %340 = vmatpush1.msra.mxu0 0.0
        %341 = vmatprep.subr.mxu0 0.0
        %342 = vmatpush1.msra.mxu0 0.0
        %343 = vmatprep.subr.mxu0 0.0
        %344 = vmatpush1.msra.mxu0 0.0
        %345 = vmatprep.subr.mxu0 0.0
        %346 = vmatpush1.msra.mxu0 0.0
        %347 = vmatprep.subr.mxu0 0.0
        %348 = vmatpush1.msra.mxu0 0.0
        %349 = vmatprep.subr.mxu0 0.0
        %350 = vmatpush1.msra.mxu0 0.0
        %351 = vmatprep.subr.mxu0 0.0
        %352 = vmatpush1.msra.mxu0 0.0
        %353 = vmatprep.subr.mxu0 0.0
        %354 = vmatpush1.msra.mxu0 0.0
        %355 = vmatprep.subr.mxu0 0.0
        %356 = vmatpush1.msra.mxu0 0.0
        %357 = vmatprep.subr.mxu0 0.0
        %358 = vmatpush1.msra.mxu0 0.0
        %359 = vmatprep.subr.mxu0 0.0
        %360 = vmatpush1.msra.mxu0 0.0
        %361 = vmatprep.subr.mxu0 0.0
        %362 = vmatpush1.msra.mxu0 0.0
        %363 = vmatprep.subr.mxu0 0.0
        %364 = vmatpush1.msra.mxu0 0.0
        %365 = vmatprep.subr.mxu0 0.0
        %366 = vmatpush1.msra.mxu0 0.0
        %367 = vmatprep.subr.mxu0 0.0
        %368 = vmatpush1.msra.mxu0 0.0
        %369 = vmatprep.subr.mxu0 0.0
        %370 = vmatpush1.msra.mxu0 0.0
        %371 = vmatprep.mubr.f32.mxu0 0.0
        %372 = vmatmul.mubr.f32.gmra.mrb[0].mxu0 %v234
        %v373 = vpop.f32.mrb[0].mxu0
        %v374 = vadd.f32 %v230, %v373
        %v375 = vpop.f32.mrb[0].mxu0
        %v376 = vadd.f32 %v230, %v375
        %377 = vdwg.mxu0
        %378 = vst [vmem:[%s206] sm:$0xff] %v303
        %379 = vst [vmem:[%s206 + $0x8] sm:$0xff] %v305
        %380 = vst [vmem:[%s206 + $0x10] sm:$0xff] %v374
        %381 = vst [vmem:[%s206 + $0x18] sm:$0xff] %v376
        %s382 = sand.u32 %s112, 1
        %s383 = scalar_lea.sflag [#allocation4], %s382
        %s384 = sand.u32 %s112, 1
        %s385 = smul.addr %s384, 32
        %s386 = scalar_lea.vmem [#allocation5], %s385
        // Predicated region
        $region37: #{tpu_custom_call.1} parent=31 // pred_check
          %p387 = pneg %p122
        $region38: #{tpu_custom_call.1} parent=31 // pred_check_branch
          %389 = sbr.rel (%p387) target = $region40
        $region39: #{tpu_custom_call.1} parent=31 // pred_region
          %s390 = smul.u32 4, %s24
          %s392 = ssub.s32 512, 512
          %393 = vsyncadd %s383, %s392
          %s394 = smul.addr %s25, 4
          %s395 = sadd.s32 %s390, %s394
          %s396 = smul.addr %s395, 128
          %s397 = scalar_lea.hbm %s3, %s396
          %s399 = sshll.u32 %s386, 4
          %s400 = int_to_ptr.vmem [resolvable:$true] %s399
          %402 = dma.vmem_to_hbm [thread:$0]  %s400, 512, %s397, %s383
        $region40: #{tpu_custom_call.1} parent=31 // pred_fallthru
          _
      $region32: #{tpu_custom_call.1} parent=5 // pred_fallthru
        _
      %p403 = scmp.le.s32.totalorder 2, %s15
      // Predicated region
      $region41: #{tpu_custom_call.1} parent=5 // pred_check
        %p404 = pneg %p403
      $region42: #{tpu_custom_call.1} parent=5 // pred_check_branch
        %406 = sbr.rel (%p404) target = $region44
      $region43: #{tpu_custom_call.1} parent=5 // pred_region
        %s407 = ssub.s32 %s15, 2
        // Predicated region
        $region45: #{tpu_custom_call.1} parent=43 // pred_check
          %p408 = pneg %p128
        $region46: #{tpu_custom_call.1} parent=43 // pred_check_branch
          %410 = sbr.rel (%p408) target = $region48
        $region47: #{tpu_custom_call.1} parent=43 // pred_region
          %s411 = sand.u32 %s113, 1
          %s412 = scalar_lea.sflag [#allocation4], %s411
          %s413 = sand.u32 %s113, 1
          %s414 = smul.addr %s413, 32
          %s415 = scalar_lea.vmem [#allocation5], %s414
          %416 = dma.done %s412, 512
        $region48: #{tpu_custom_call.1} parent=43 // pred_fallthru
          _
      $region44: #{tpu_custom_call.1} parent=5 // pred_fallthru
        _
    $region6: #{tpu_custom_call.1} parent=1 // loop_footer
      %s19 = sadd.s32 1, %s15
    $region7: #{tpu_custom_call.1} parent=1 // loop_footer_branch
      %14 = sbr.rel target = $region3
    $region8: #{tpu_custom_call.1} parent=1 // loop_exit
      _
    %417 = vsyncpa [#allocation3], 1
    %s418 = scalar_lea.sflag [#allocation3], 1
    %419 = vsyncpa %s418, 1
    %420 = vsyncpa [#allocation4], 1
    %s421 = scalar_lea.sflag [#allocation4], 1
    %422 = vsyncpa %s421, 1

</llo_original>
